<compile_context>
chip_gen: v6e
topology: v6e:2x2x1
jax: 0.10.0
libtpu: 0.0.40
codegen_flags: <defaults>
</compile_context>

<pallas_src>
import functools

import jax
import jax.numpy as jnp
from jax.experimental import pallas as pl
from jax.experimental.pallas import tpu as pltpu


def _lora_linear_kernel(x_ref, wt_ref, b_ref, xa_ref, bl_ref, o_ref, acc_ref):
    k = pl.program_id(2)
    k_last = pl.num_programs(2) - 1

    # Base GEMM partial product for this (i, j, k) tile: [tm, tk] @ [tk, tn].
    partial = jnp.dot(x_ref[...], wt_ref[...],
                      preferred_element_type=jnp.float32)          # [tm, tn]

    @pl.when(k == 0)
    def _first():
        # Fold bias into the first write: no zero-init, no epilogue bias add.
        acc_ref[...] = partial + b_ref[...].astype(jnp.float32)

    @pl.when(k != 0)
    def _accumulate():
        acc_ref[...] += partial

    @pl.when(k == k_last)
    def _finalize():
        # Tiny LoRA second matmul: xa (already scaled by alpha/rank) @ B.
        lora = jnp.dot(xa_ref[...], bl_ref[...],
                       preferred_element_type=jnp.float32)          # [tm, tn]
        o_ref[...] = (acc_ref[...] + lora).astype(o_ref.dtype)


def _choose_tile(dim, pref, multiple):
    """Largest tile <= pref that divides dim and is a multiple of `multiple`,
    falling back to the full extent (always legal as a block shape)."""
    if dim <= pref:
        return dim
    t = (pref // multiple) * multiple
    while t >= multiple:
        if dim % t == 0:
            return t
        t -= multiple
    return dim


def lora_linear(x, w, b, lora_a, lora_b, *, alpha, rank,
                tm=256, tn=512, tk=512):
    """y = x @ w.T + b + (alpha/rank) * (x @ lora_a) @ lora_b

    x:      [M, K]   (batch, in_features)
    w:      [N, K]   (out_features, in_features) -- PyTorch Linear layout
    b:      [N]
    lora_a: [K, r]
    lora_b: [r, N]
    """
    M, K = x.shape
    N = w.shape[0]
    r = lora_a.shape[1]
    assert w.shape == (N, K)
    assert lora_b.shape == (r, N)
    assert b.shape == (N,)

    # Tile selection: sublane dims need multiples of 8, lane dims of 128
    # (or full extent).
    tm = _choose_tile(M, tm, 8)
    tn = _choose_tile(N, tn, 128)
    tk = _choose_tile(K, tk, 128)
    assert M % tm == 0 and N % tn == 0 and K % tk == 0

    scaling = float(alpha) / float(rank)

    # Hoisted LoRA first matmul (tiny: M x K x r), scale folded in f32.
    xa = (jnp.dot(x, lora_a, preferred_element_type=jnp.float32)
          * scaling).astype(x.dtype)                                 # [M, r]

    # Pre-transpose W once: [K, N], MXU-native lane-dense RHS.
    w_t = jnp.transpose(w)                                           # [K, N]

    # Bias kept 2D so it tiles cleanly along N.
    b2d = b.reshape(1, N)

    grid = (M // tm, N // tn, K // tk)

    # VMEM budget: double-buffered inputs/outputs + f32 accumulator (+ slack).
    isz_x, isz_w, isz_o = x.dtype.itemsize, w_t.dtype.itemsize, x.dtype.itemsize
    working = 2 * (tm * tk * isz_x + tk * tn * isz_w + tm * r * isz_x
                   + r * tn * lora_b.dtype.itemsize + tn * b.dtype.itemsize
                   + tm * tn * isz_o) + tm * tn * 4
    vmem_limit = min(int(working * 1.5) + (8 << 20), 100 << 20)

    cost = pl.CostEstimate(
        flops=2 * M * N * K + 2 * M * r * N,
        transcendentals=0,
        bytes_accessed=(M * K * isz_x + K * N * isz_w + M * r * isz_x
                        + r * N * lora_b.dtype.itemsize
                        + N * b.dtype.itemsize + M * N * isz_o),
    )

    grid_spec = pltpu.PrefetchScalarGridSpec(
        num_scalar_prefetch=0,
        grid=grid,
        in_specs=[
            pl.BlockSpec((tm, tk), lambda i, j, k: (i, k)),   # x
            pl.BlockSpec((tk, tn), lambda i, j, k: (k, j)),   # W.T  [in, out]
            pl.BlockSpec((1, tn), lambda i, j, k: (0, j)),    # bias
            pl.BlockSpec((tm, r), lambda i, j, k: (i, 0)),    # xa = scale*(x@A)
            pl.BlockSpec((r, tn), lambda i, j, k: (0, j)),    # lora B
        ],
        out_specs=pl.BlockSpec((tm, tn), lambda i, j, k: (i, j)),
        scratch_shapes=[
            pltpu.VMEM((tm, tn), jnp.float32),   # base + bias accumulator
        ],
    )

    return pl.pallas_call(
        _lora_linear_kernel,
        out_shape=jax.ShapeDtypeStruct((M, N), x.dtype),
        grid_spec=grid_spec,
        compiler_params=pltpu.CompilerParams(
            dimension_semantics=("parallel", "parallel", "arbitrary"),
            vmem_limit_bytes=vmem_limit),
        cost_estimate=cost,
    )(x, w_t, b2d, xa, lora_b)


if __name__ == "__main__":
    # Small, lane/sublane-friendly shapes.  Explicit small tiles so the demo
    # exercises the multi-step K reduction and the (i, j) parallel grid.
    batch, in_features, out_features = 64, 256, 256
    rank, alpha = 8, 16.0

    key = jax.random.PRNGKey(0)
    kx, kw, kb, ka, kbl = jax.random.split(key, 5)

    x = jax.random.normal(kx, (batch, in_features), dtype=jnp.float32)
    w = jax.random.normal(kw, (out_features, in_features), dtype=jnp.float32) * 0.05
    b = jax.random.normal(kb, (out_features,), dtype=jnp.float32) * 0.1
    lora_a = jax.random.normal(ka, (in_features, rank), dtype=jnp.float32) * 0.05
    lora_b = jax.random.normal(kbl, (rank, out_features), dtype=jnp.float32) * 0.05

    fn = jax.jit(functools.partial(lora_linear, alpha=alpha, rank=rank,
                                   tm=32, tn=128, tk=128))
    y = fn(x, w, b, lora_a, lora_b)
    y = jax.block_until_ready(y)

    # Pure-JAX reference check.
    ref = x @ w.T + b + (alpha / rank) * ((x @ lora_a) @ lora_b)
    assert jnp.allclose(y, ref, atol=2e-3, rtol=2e-3), "mismatch vs reference"

    print("KERNEL_OK")
</pallas_src>

<mosaic_0001>
module attributes {stable_mosaic.version = 11 : i64} {
  func.func @_lora_linear_kernel(%arg0: i32, %arg1: i32, %arg2: i32, %arg3: memref<32x128xf32, #tpu.memory_space<vmem>>, %arg4: memref<128x128xf32, #tpu.memory_space<vmem>>, %arg5: memref<1x128xf32, #tpu.memory_space<vmem>>, %arg6: memref<32x8xf32, #tpu.memory_space<vmem>>, %arg7: memref<8x128xf32, #tpu.memory_space<vmem>>, %arg8: memref<32x128xf32, #tpu.memory_space<vmem>>, %arg9: memref<32x128xf32, #tpu.memory_space<vmem>>) attributes {dimension_semantics = [#tpu.dimension_semantics<parallel>, #tpu.dimension_semantics<parallel>, #tpu.dimension_semantics<arbitrary>], iteration_bounds = array<i64: 2, 2, 2>, scalar_prefetch = 0 : i64, scratch_operands = 1 : i64, tpu.core_type = #tpu.core_type<tc>, window_params = [{transform_indices = @transform_0, window_bounds = array<i64: 32, 128>}, {transform_indices = @transform_1, window_bounds = array<i64: 128, 128>}, {transform_indices = @transform_2, window_bounds = array<i64: 1, 128>}, {transform_indices = @transform_3, window_bounds = array<i64: 32, 8>}, {transform_indices = @transform_4, window_bounds = array<i64: 8, 128>}, {transform_indices = @transform_5, window_bounds = array<i64: 32, 128>}]} {
    %c0 = arith.constant 0 : index
    %c0_0 = arith.constant 0 : index
    %0 = vector.load %arg3[%c0, %c0_0] : memref<32x128xf32, #tpu.memory_space<vmem>>, vector<32x128xf32>
    %c0_1 = arith.constant 0 : index
    %c0_2 = arith.constant 0 : index
    %1 = vector.load %arg4[%c0_1, %c0_2] : memref<128x128xf32, #tpu.memory_space<vmem>>, vector<128x128xf32>
    %cst = arith.constant dense<0.000000e+00> : vector<32x128xf32>
    %2 = tpu.matmul %0, %1, %cst {dimension_numbers = #tpu.dot_dimension_numbers<[1], [0], [0], [1], [0, 0, 1, 1], [], []>} : vector<32x128xf32>, vector<128x128xf32>, vector<32x128xf32> -> vector<32x128xf32>
    %c0_i32 = arith.constant 0 : i32
    %3 = arith.cmpi eq, %arg2, %c0_i32 : i32
    %4 = arith.extui %3 : i1 to i32
    %c0_i32_3 = arith.constant 0 : i32
    %5 = arith.cmpi ne, %4, %c0_i32_3 : i32
    scf.if %5 {
      %c0_7 = arith.constant 0 : index
      %c0_8 = arith.constant 0 : index
      %12 = vector.load %arg5[%c0_7, %c0_8] : memref<1x128xf32, #tpu.memory_space<vmem>>, vector<1x128xf32>
      %13 = vector.broadcast %12 : vector<1x128xf32> to vector<32x128xf32>
      %14 = arith.addf %2, %13 : vector<32x128xf32>
      %c0_9 = arith.constant 0 : index
      %c0_10 = arith.constant 0 : index
      %15 = vector.load %arg9[%c0_9, %c0_10] : memref<32x128xf32, #tpu.memory_space<vmem>>, vector<32x128xf32>
      tpu.vector_store %arg9[%c0_9, %c0_10], %14 {strides = array<i32>} : memref<32x128xf32, #tpu.memory_space<vmem>>, vector<32x128xf32>,
    } else {
    }
    %c0_i32_4 = arith.constant 0 : i32
    %6 = arith.cmpi ne, %arg2, %c0_i32_4 : i32
    %7 = arith.extui %6 : i1 to i32
    %c0_i32_5 = arith.constant 0 : i32
    %8 = arith.cmpi ne, %7, %c0_i32_5 : i32
    scf.if %8 {
      %c0_7 = arith.constant 0 : index
      %c0_8 = arith.constant 0 : index
      %12 = vector.load %arg9[%c0_7, %c0_8] : memref<32x128xf32, #tpu.memory_space<vmem>>, vector<32x128xf32>
      %13 = arith.addf %12, %2 : vector<32x128xf32>
      %c0_9 = arith.constant 0 : index
      %c0_10 = arith.constant 0 : index
      %14 = vector.load %arg9[%c0_9, %c0_10] : memref<32x128xf32, #tpu.memory_space<vmem>>, vector<32x128xf32>
      tpu.vector_store %arg9[%c0_9, %c0_10], %13 {strides = array<i32>} : memref<32x128xf32, #tpu.memory_space<vmem>>, vector<32x128xf32>,
    } else {
    }
    %c1_i32 = arith.constant 1 : i32
    %9 = arith.cmpi eq, %arg2, %c1_i32 : i32
    %10 = arith.extui %9 : i1 to i32
    %c0_i32_6 = arith.constant 0 : i32
    %11 = arith.cmpi ne, %10, %c0_i32_6 : i32
    scf.if %11 {
      %c0_7 = arith.constant 0 : index
      %c0_8 = arith.constant 0 : index
      %12 = vector.load %arg6[%c0_7, %c0_8] : memref<32x8xf32, #tpu.memory_space<vmem>>, vector<32x8xf32>
      %c0_9 = arith.constant 0 : index
      %c0_10 = arith.constant 0 : index
      %13 = vector.load %arg7[%c0_9, %c0_10] : memref<8x128xf32, #tpu.memory_space<vmem>>, vector<8x128xf32>
      %cst_11 = arith.constant dense<0.000000e+00> : vector<32x128xf32>
      %14 = tpu.matmul %12, %13, %cst_11 {dimension_numbers = #tpu.dot_dimension_numbers<[1], [0], [0], [1], [0, 0, 1, 1], [], []>} : vector<32x8xf32>, vector<8x128xf32>, vector<32x128xf32> -> vector<32x128xf32>
      %c0_12 = arith.constant 0 : index
      %c0_13 = arith.constant 0 : index
      %15 = vector.load %arg9[%c0_12, %c0_13] : memref<32x128xf32, #tpu.memory_space<vmem>>, vector<32x128xf32>
      %16 = arith.addf %15, %14 : vector<32x128xf32>
      %c0_14 = arith.constant 0 : index
      %c0_15 = arith.constant 0 : index
      %17 = vector.load %arg8[%c0_14, %c0_15] : memref<32x128xf32, #tpu.memory_space<vmem>>, vector<32x128xf32>
      tpu.vector_store %arg8[%c0_14, %c0_15], %16 {strides = array<i32>} : memref<32x128xf32, #tpu.memory_space<vmem>>, vector<32x128xf32>,
    } else {
    }
    return
  }
  func.func @transform_0(%arg0: i32, %arg1: i32, %arg2: i32) -> (i32, i32) {
    %c0_i32 = arith.constant 0 : i32
    return %arg0, %arg2 : i32, i32
  }
  func.func @transform_1(%arg0: i32, %arg1: i32, %arg2: i32) -> (i32, i32) {
    %c0_i32 = arith.constant 0 : i32
    return %arg2, %arg1 : i32, i32
  }
  func.func @transform_2(%arg0: i32, %arg1: i32, %arg2: i32) -> (i32, i32) {
    %c0_i32 = arith.constant 0 : i32
    %c0_i32_0 = arith.constant 0 : i32
    return %c0_i32, %arg1 : i32, i32
  }
  func.func @transform_3(%arg0: i32, %arg1: i32, %arg2: i32) -> (i32, i32) {
    %c0_i32 = arith.constant 0 : i32
    %c0_i32_0 = arith.constant 0 : i32
    return %arg0, %c0_i32 : i32, i32
  }
  func.func @transform_4(%arg0: i32, %arg1: i32, %arg2: i32) -> (i32, i32) {
    %c0_i32 = arith.constant 0 : i32
    %c0_i32_0 = arith.constant 0 : i32
    return %c0_i32, %arg1 : i32, i32
  }
  func.func @transform_5(%arg0: i32, %arg1: i32, %arg2: i32) -> (i32, i32) {
    %c0_i32 = arith.constant 0 : i32
    return %arg0, %arg1 : i32, i32
  }
}

</mosaic_0001>

<llo_original>
// kernel: lora_linear.1
$region0: #{lora_linear.1}
  #allocation0 [shape = 'u32[]', space=smem, size = 0x4, offset = 0x4, fixed_abs, tag = 'smem constant byte address 0x4 - core index']
  #allocation1 [shape = 'u32[144,128]{1,0:T(1,128)}', space=vmem, size = 0x12000, scoped, tag = 'internal scratch']
  #allocation2 [shape = 'f32[32,128]{1,0:T(8,128)}', space=vmem, size = 0x4000, scoped, tag = 'scratch operand']
  %s0 = inlined_call_operand.vmem [shape: f32[64,256], index: 0, kind: input, shape index: {}]
  %s1 = inlined_call_operand.vmem [shape: f32[256,256], index: 1, kind: input, shape index: {}]
  %s2 = inlined_call_operand.vmem [shape: f32[1,256], index: 2, kind: input, shape index: {}]
  %s3 = inlined_call_operand.vmem [shape: f32[64,8], index: 3, kind: input, shape index: {}]
  %s4 = inlined_call_operand.vmem [shape: f32[8,256], index: 4, kind: input, shape index: {}]
  %s5 = inlined_call_operand.hbm [shape: f32[64,256], index: 5, kind: output, shape index: {}]
  %s6 = sld [smem:[#allocation0]]
  $region141: #{lora_linear.1} parent=0
    _
  %s8 = ssub.s32 1, %s6
  %s9 = scalar_select 0, %s8, %s6
  $region1: #{lora_linear.1} parent=0
    #allocation3 [shape = 'u8[32768]{0}', space=vmem, size = 0x8000, scoped, tag = 'input window, operand 0']
    #allocation4 [shape = 'u8[131072]{0}', space=vmem, size = 0x20000, scoped, tag = 'input window, operand 1']
    #allocation5 [shape = 'u8[32768]{0}', space=vmem, size = 0x8000, scoped, tag = 'output window, operand 0']
    #allocation6 [shape = 's32[2]{0}', space=sflag, size = 0x8, scoped, tag = 'scoped memory for lora_linear.1']
    %10 = vsyncpa [#allocation6], 0
    %s11 = scalar_lea.sflag [#allocation6], 1
    %12 = vsyncpa %s11, 0
    loop: start=0, step=1, limit=10
    $region2: #{lora_linear.1} parent=1 // loop_pre_header
      _
    $region3: #{lora_linear.1} parent=1 // loop_header
      %s14 = sphi 0, %s18
      %p15 = scmp.ge.s32.totalorder %s14, 10
      %s21 = sphi 0, %s40
      %s22 = sphi 0, %s36
      %s23 = sphi 0, %s32
      %s24 = sphi 0, %s21
      %s25 = sphi 0, %s22
      %s26 = sphi 0, %s23
      %s27 = sphi 0, %s24
      %s28 = sphi 0, %s25
      %s29 = sphi 0, %s26
      %s45 = sphi 0, %s47
      %s48 = sphi 0, %s45
      %s49 = sphi 0, %s48
      %s65 = sphi 0, %s49
      %s73 = sphi 0, %s75
      %s76 = sphi 0, %s73
      %s77 = sphi 0, %s76
      %s93 = sphi 0, %s77
      %s99 = sphi 0, %s101
      %s102 = sphi 0, %s99
      %s103 = sphi 0, %s102
      %s119 = sphi 0, %s103
      %s125 = sphi 0, %s127
      %s128 = sphi 0, %s125
      %s129 = sphi 0, %s128
      %s145 = sphi 0, %s129
      %s151 = sphi 0, %s153
      %s154 = sphi 0, %s151
      %s155 = sphi 0, %s154
      %s171 = sphi 0, %s155
      %s179 = sphi 0, %s181
      %s182 = sphi 0, %s179
      %s183 = sphi 0, %s182
      %s199 = sphi 0, %s183
    $region4: #{lora_linear.1} parent=1 // loop_header_branch
      %17 = sbr.rel (%p15) target = $region8
    $region5: #{lora_linear.1} parent=1 // loop_body
      %s19 = ssub.s32 %s14, 1
      %s20 = ssub.s32 %s14, 2
      %s30 = sadd.s32 1, %s23
      %p31 = scmp.ge.s32.totalorder %s30, 2
      %s32 = scalar_select %p31, 0, %s30
      %s33 = sadd.s32 1, %s22
      %s34 = scalar_select %p31, %s33, %s22
      %p35 = scmp.ge.s32.totalorder %s34, 2
      %s36 = scalar_select %p35, 0, %s34
      %s37 = sadd.s32 1, %s21
      %s38 = scalar_select %p35, %s37, %s21
      %p39 = scmp.ge.s32.totalorder %s38, 2
      %s40 = scalar_select %p39, 0, %s38
      %s41 = ssub.s32 %s21, %s40
      %s42 = ssub.s32 %s23, %s32
      %s43 = sor.u32 %s41, %s42
      %p44 = scmp.eq.s32.totalorder %s43, 0
      %s46 = sadd.s32 %s45, 1
      %s47 = scalar_select %p44, %s45, %s46
      %p50 = pneg %p44
      %p51 = scmp.eq.s32.totalorder %s14, 7
      %p52 = por %p50, %p51
      %p53 = scmp.ne.s32.totalorder %s45, %s48
      %p54 = scmp.eq.s32.totalorder %s14, 0
      %p55 = por %p53, %p54
      %p56 = scmp.ne.s32.totalorder %s45, %s48
      %p57 = scmp.eq.s32.totalorder %s19, 7
      %p58 = por %p56, %p57
      %p59 = scmp.ne.s32.totalorder %s48, %s49
      %p60 = scmp.eq.s32.totalorder %s19, 0
      %p61 = por %p59, %p60
      %p62 = scmp.ne.s32.totalorder %s48, %s49
      %p63 = scmp.eq.s32.totalorder %s20, 7
      %p64 = por %p62, %p63
      %p66 = scmp.ne.s32.totalorder %s49, %s65
      %p67 = scmp.eq.s32.totalorder %s20, 0
      %p68 = por %p66, %p67
      %s69 = ssub.s32 %s23, %s32
      %s70 = ssub.s32 %s22, %s36
      %s71 = sor.u32 %s69, %s70
      %p72 = scmp.eq.s32.totalorder %s71, 0
      %s74 = sadd.s32 %s73, 1
      %s75 = scalar_select %p72, %s73, %s74
      %p78 = pneg %p72
      %p79 = scmp.eq.s32.totalorder %s14, 7
      %p80 = por %p78, %p79
      %p81 = scmp.ne.s32.totalorder %s73, %s76
      %p82 = scmp.eq.s32.totalorder %s14, 0
      %p83 = por %p81, %p82
      %p84 = scmp.ne.s32.totalorder %s73, %s76
      %p85 = scmp.eq.s32.totalorder %s19, 7
      %p86 = por %p84, %p85
      %p87 = scmp.ne.s32.totalorder %s76, %s77
      %p88 = scmp.eq.s32.totalorder %s19, 0
      %p89 = por %p87, %p88
      %p90 = scmp.ne.s32.totalorder %s76, %s77
      %p91 = scmp.eq.s32.totalorder %s20, 7
      %p92 = por %p90, %p91
      %p94 = scmp.ne.s32.totalorder %s77, %s93
      %p95 = scmp.eq.s32.totalorder %s20, 0
      %p96 = por %p94, %p95
      %s97 = ssub.s32 %s22, %s36
      %p98 = scmp.eq.s32.totalorder %s97, 0
      %s100 = sadd.s32 %s99, 1
      %s101 = scalar_select %p98, %s99, %s100
      %p104 = pneg %p98
      %p105 = scmp.eq.s32.totalorder %s14, 7
      %p106 = por %p104, %p105
      %p107 = scmp.ne.s32.totalorder %s99, %s102
      %p108 = scmp.eq.s32.totalorder %s14, 0
      %p109 = por %p107, %p108
      %p110 = scmp.ne.s32.totalorder %s99, %s102
      %p111 = scmp.eq.s32.totalorder %s19, 7
      %p112 = por %p110, %p111
      %p113 = scmp.ne.s32.totalorder %s102, %s103
      %p114 = scmp.eq.s32.totalorder %s19, 0
      %p115 = por %p113, %p114
      %p116 = scmp.ne.s32.totalorder %s102, %s103
      %p117 = scmp.eq.s32.totalorder %s20, 7
      %p118 = por %p116, %p117
      %p120 = scmp.ne.s32.totalorder %s103, %s119
      %p121 = scmp.eq.s32.totalorder %s20, 0
      %p122 = por %p120, %p121
      %s123 = ssub.s32 %s21, %s40
      %p124 = scmp.eq.s32.totalorder %s123, 0
      %s126 = sadd.s32 %s125, 1
      %s127 = scalar_select %p124, %s125, %s126
      %p130 = pneg %p124
      %p131 = scmp.eq.s32.totalorder %s14, 7
      %p132 = por %p130, %p131
      %p133 = scmp.ne.s32.totalorder %s125, %s128
      %p134 = scmp.eq.s32.totalorder %s14, 0
      %p135 = por %p133, %p134
      %p136 = scmp.ne.s32.totalorder %s125, %s128
      %p137 = scmp.eq.s32.totalorder %s19, 7
      %p138 = por %p136, %p137
      %p139 = scmp.ne.s32.totalorder %s128, %s129
      %p140 = scmp.eq.s32.totalorder %s19, 0
      %p141 = por %p139, %p140
      %p142 = scmp.ne.s32.totalorder %s128, %s129
      %p143 = scmp.eq.s32.totalorder %s20, 7
      %p144 = por %p142, %p143
      %p146 = scmp.ne.s32.totalorder %s129, %s145
      %p147 = scmp.eq.s32.totalorder %s20, 0
      %p148 = por %p146, %p147
      %s149 = ssub.s32 %s22, %s36
      %p150 = scmp.eq.s32.totalorder %s149, 0
      %s152 = sadd.s32 %s151, 1
      %s153 = scalar_select %p150, %s151, %s152
      %p156 = pneg %p150
      %p157 = scmp.eq.s32.totalorder %s14, 7
      %p158 = por %p156, %p157
      %p159 = scmp.ne.s32.totalorder %s151, %s154
      %p160 = scmp.eq.s32.totalorder %s14, 0
      %p161 = por %p159, %p160
      %p162 = scmp.ne.s32.totalorder %s151, %s154
      %p163 = scmp.eq.s32.totalorder %s19, 7
      %p164 = por %p162, %p163
      %p165 = scmp.ne.s32.totalorder %s154, %s155
      %p166 = scmp.eq.s32.totalorder %s19, 0
      %p167 = por %p165, %p166
      %p168 = scmp.ne.s32.totalorder %s154, %s155
      %p169 = scmp.eq.s32.totalorder %s20, 7
      %p170 = por %p168, %p169
      %p172 = scmp.ne.s32.totalorder %s155, %s171
      %p173 = scmp.eq.s32.totalorder %s20, 0
      %p174 = por %p172, %p173
      %s175 = ssub.s32 %s21, %s40
      %s176 = ssub.s32 %s22, %s36
      %s177 = sor.u32 %s175, %s176
      %p178 = scmp.eq.s32.totalorder %s177, 0
      %s180 = sadd.s32 %s179, 1
      %s181 = scalar_select %p178, %s179, %s180
      %p184 = pneg %p178
      %p185 = scmp.eq.s32.totalorder %s14, 7
      %p186 = por %p184, %p185
      %p187 = scmp.ne.s32.totalorder %s179, %s182
      %p188 = scmp.eq.s32.totalorder %s14, 0
      %p189 = por %p187, %p188
      %p190 = scmp.ne.s32.totalorder %s179, %s182
      %p191 = scmp.eq.s32.totalorder %s19, 7
      %p192 = por %p190, %p191
      %p193 = scmp.ne.s32.totalorder %s182, %s183
      %p194 = scmp.eq.s32.totalorder %s19, 0
      %p195 = por %p193, %p194
      %p196 = scmp.ne.s32.totalorder %s182, %s183
      %p197 = scmp.eq.s32.totalorder %s20, 7
      %p198 = por %p196, %p197
      %p200 = scmp.ne.s32.totalorder %s183, %s199
      %p201 = scmp.eq.s32.totalorder %s20, 0
      %p202 = por %p200, %p201
      %p203 = scmp.le.s32.totalorder 1, %s14
      %p204 = scmp.lt.s32.totalorder %s14, 9
      %p205 = pnand %p203, %p204
      %p206 = pneg %p205
      // Predicated region
      $region9: #{lora_linear.1} parent=5 // pred_check
        _
      $region10: #{lora_linear.1} parent=5 // pred_check_branch
        %208 = sbr.rel (%p205) target = $region12
      $region11: #{lora_linear.1} parent=5 // pred_region
        %s209 = ssub.s32 %s14, 1
      $region12: #{lora_linear.1} parent=5 // pred_fallthru
        _
      %p210 = scmp.lt.s32.totalorder %s14, 8
      // Predicated region
      $region13: #{lora_linear.1} parent=5 // pred_check
        %p211 = pneg %p210
      $region14: #{lora_linear.1} parent=5 // pred_check_branch
        %213 = sbr.rel (%p211) target = $region16
      $region15: #{lora_linear.1} parent=5 // pred_region
        // Predicated region
        $region17: #{lora_linear.1} parent=15 // pred_check
          %p214 = pneg %p55
        $region18: #{lora_linear.1} parent=15 // pred_check_branch
          %216 = sbr.rel (%p214) target = $region20
        $region19: #{lora_linear.1} parent=15 // pred_region
          %s217 = sand.u32 %s45, 1
          %s218 = sand.u32 %s45, 1
          %s219 = smul.addr %s218, 32
          %s220 = scalar_lea.vmem [#allocation3], %s219
          %s221 = smul.u32 4, %s21
          %s222 = smul.addr %s221, 2
          %s223 = sadd.s32 %s23, %s222
          %s224 = smul.addr %s223, 8
          %s225 = scalar_lea.vmem %s0, %s224
          // Predicated region
          $region21: #{lora_linear.1} parent=19 // pred_check
            _
          $region22: #{lora_linear.1} parent=19 // pred_check_branch
            %227 = sbr.rel (0) target = $region24
          $region23: #{lora_linear.1} parent=19 // pred_region
            // Predicated region
            $region25: #{lora_linear.1} parent=23 // pred_check
              _
            $region26: #{lora_linear.1} parent=23 // pred_check_branch
              %229 = sbr.rel (0) target = $region28
            $region27: #{lora_linear.1} parent=23 // pred_region
              // Predicated region
              $region40: #{lora_linear.1} parent=27 // pred_check
                _
              $region41: #{lora_linear.1} parent=27 // pred_check_branch
                %251 = sbr.rel (0) target = $region43
              $region42: #{lora_linear.1} parent=27 // pred_region
                loop: start=0, step=1, limit=1
                $region44: #{lora_linear.1} parent=42 // loop_pre_header
                  _
                $region45: #{lora_linear.1} parent=42 // loop_header
                  %s253 = sphi 0, %s257
                  %p254 = scmp.ge.s32.totalorder %s253, 1
                  %s258 = sphi %s225, %s225
                  %s259 = sphi %s220, %s220
                $region46: #{lora_linear.1} parent=42 // loop_header_branch
                  %256 = sbr.rel (%p254) target = $region50
                $region47: #{lora_linear.1} parent=42 // loop_body
                  %v260 = vld [vmem:[%s258] sm:$0xff]
                  %261 = vst [vmem:[%s259] sm:$0xff] %v260
                  %v262 = vld [vmem:[%s258 + $0x10] sm:$0xff]
                  %263 = vst [vmem:[%s259 + $0x8] sm:$0xff] %v262
                  %v264 = vld [vmem:[%s258 + $0x20] sm:$0xff]
                  %265 = vst [vmem:[%s259 + $0x10] sm:$0xff] %v264
                  %v266 = vld [vmem:[%s258 + $0x30] sm:$0xff]
                  %267 = vst [vmem:[%s259 + $0x18] sm:$0xff] %v266
                $region48: #{lora_linear.1} parent=42 // loop_footer
                  %s257 = sadd.s32 1, %s253
                $region49: #{lora_linear.1} parent=42 // loop_footer_branch
                  %252 = sbr.rel target = $region45
                $region50: #{lora_linear.1} parent=42 // loop_exit
                  _
              $region43: #{lora_linear.1} parent=27 // pred_fallthru
                _
              // Predicated region
              $region51: #{lora_linear.1} parent=27 // pred_check
                _
              $region52: #{lora_linear.1} parent=27 // pred_check_branch
                %269 = sbr.rel target = $region54
              $region53: #{lora_linear.1} parent=27 // pred_region
                _
              $region54: #{lora_linear.1} parent=27 // pred_fallthru
                _
            $region28: #{lora_linear.1} parent=23 // pred_fallthru
              _
            // Predicated region
            $region29: #{lora_linear.1} parent=23 // pred_check
              _
            $region30: #{lora_linear.1} parent=23 // pred_check_branch
              %231 = sbr.rel target = $region32
            $region31: #{lora_linear.1} parent=23 // pred_region
              %s233 = ssub.s32 256, 1
              loop: start=0, step=1, limit=1
              $region33: #{lora_linear.1} parent=31 // loop_pre_header
                _
              $region34: #{lora_linear.1} parent=31 // loop_header
                %s235 = sphi 0, %s239
                %p236 = scmp.ge.s32.totalorder %s235, 1
                %s240 = sphi %s225, %s225
                %s241 = sphi %s220, %s220
              $region35: #{lora_linear.1} parent=31 // loop_header_branch
                %238 = sbr.rel (%p236) target = $region39
              $region36: #{lora_linear.1} parent=31 // loop_body
                %v242 = vld [vmem:[%s240] sm:%s233]
                %243 = vst [vmem:[%s241] sm:%s233] %v242
                %v244 = vld [vmem:[%s240 + $0x10] sm:%s233]
                %245 = vst [vmem:[%s241 + $0x8] sm:%s233] %v244
                %v246 = vld [vmem:[%s240 + $0x20] sm:%s233]
                %247 = vst [vmem:[%s241 + $0x10] sm:%s233] %v246
                %v248 = vld [vmem:[%s240 + $0x30] sm:%s233]
                %249 = vst [vmem:[%s241 + $0x18] sm:%s233] %v248
              $region37: #{lora_linear.1} parent=31 // loop_footer
                %s239 = sadd.s32 1, %s235
              $region38: #{lora_linear.1} parent=31 // loop_footer_branch
                %234 = sbr.rel target = $region34
              $region39: #{lora_linear.1} parent=31 // loop_exit
                _
            $region32: #{lora_linear.1} parent=23 // pred_fallthru
              _
          $region24: #{lora_linear.1} parent=19 // pred_fallthru
            _
          %270 = vnop
        $region20: #{lora_linear.1} parent=15 // pred_fallthru
          _
        // Predicated region
        $region55: #{lora_linear.1} parent=15 // pred_check
          %p271 = pneg %p83
        $region56: #{lora_linear.1} parent=15 // pred_check_branch
          %273 = sbr.rel (%p271) target = $region58
        $region57: #{lora_linear.1} parent=15 // pred_region
          %s274 = sand.u32 %s73, 1
          %s275 = sand.u32 %s73, 1
          %s276 = smul.addr %s275, 128
          %s277 = scalar_lea.vmem [#allocation4], %s276
          %s278 = smul.u32 16, %s23
          %s279 = smul.addr %s278, 2
          %s280 = sadd.s32 %s22, %s279
          %s281 = smul.addr %s280, 8
          %s282 = scalar_lea.vmem %s1, %s281
          // Predicated region
          $region59: #{lora_linear.1} parent=57 // pred_check
            _
          $region60: #{lora_linear.1} parent=57 // pred_check_branch
            %284 = sbr.rel (0) target = $region62
          $region61: #{lora_linear.1} parent=57 // pred_region
            // Predicated region
            $region63: #{lora_linear.1} parent=61 // pred_check
              _
            $region64: #{lora_linear.1} parent=61 // pred_check_branch
              %286 = sbr.rel (0) target = $region66
            $region65: #{lora_linear.1} parent=61 // pred_region
              // Predicated region
              $region78: #{lora_linear.1} parent=65 // pred_check
                _
              $region79: #{lora_linear.1} parent=65 // pred_check_branch
                %332 = sbr.rel (0) target = $region81
              $region80: #{lora_linear.1} parent=65 // pred_region
                loop: start=0, step=1, limit=1
                $region82: #{lora_linear.1} parent=80 // loop_pre_header
                  _
                $region83: #{lora_linear.1} parent=80 // loop_header
                  %s334 = sphi 0, %s338
                  %p335 = scmp.ge.s32.totalorder %s334, 1
                  %s339 = sphi %s282, %s282
                  %s340 = sphi %s277, %s277
                $region84: #{lora_linear.1} parent=80 // loop_header_branch
                  %337 = sbr.rel (%p335) target = $region88
                $region85: #{lora_linear.1} parent=80 // loop_body
                  %v341 = vld [vmem:[%s339] sm:$0xff]
                  %342 = vst [vmem:[%s340] sm:$0xff] %v341
                  %v343 = vld [vmem:[%s339 + $0x10] sm:$0xff]
                  %344 = vst [vmem:[%s340 + $0x8] sm:$0xff] %v343
                  %v345 = vld [vmem:[%s339 + $0x20] sm:$0xff]
                  %346 = vst [vmem:[%s340 + $0x10] sm:$0xff] %v345
                  %v347 = vld [vmem:[%s339 + $0x30] sm:$0xff]
                  %348 = vst [vmem:[%s340 + $0x18] sm:$0xff] %v347
                  %v349 = vld [vmem:[%s339 + $0x40] sm:$0xff]
                  %350 = vst [vmem:[%s340 + $0x20] sm:$0xff] %v349
                  %v351 = vld [vmem:[%s339 + $0x50] sm:$0xff]
                  %352 = vst [vmem:[%s340 + $0x28] sm:$0xff] %v351
                  %v353 = vld [vmem:[%s339 + $0x60] sm:$0xff]
                  %354 = vst [vmem:[%s340 + $0x30] sm:$0xff] %v353
                  %v355 = vld [vmem:[%s339 + $0x70] sm:$0xff]
                  %356 = vst [vmem:[%s340 + $0x38] sm:$0xff] %v355
                  %v357 = vld [vmem:[%s339 + $0x80] sm:$0xff]
                  %358 = vst [vmem:[%s340 + $0x40] sm:$0xff] %v357
                  %v359 = vld [vmem:[%s339 + $0x90] sm:$0xff]
                  %360 = vst [vmem:[%s340 + $0x48] sm:$0xff] %v359
                  %v361 = vld [vmem:[%s339 + $0xa0] sm:$0xff]
                  %362 = vst [vmem:[%s340 + $0x50] sm:$0xff] %v361
                  %v363 = vld [vmem:[%s339 + $0xb0] sm:$0xff]
                  %364 = vst [vmem:[%s340 + $0x58] sm:$0xff] %v363
                  %v365 = vld [vmem:[%s339 + $0xc0] sm:$0xff]
                  %366 = vst [vmem:[%s340 + $0x60] sm:$0xff] %v365
                  %v367 = vld [vmem:[%s339 + $0xd0] sm:$0xff]
                  %368 = vst [vmem:[%s340 + $0x68] sm:$0xff] %v367
                  %v369 = vld [vmem:[%s339 + $0xe0] sm:$0xff]
                  %370 = vst [vmem:[%s340 + $0x70] sm:$0xff] %v369
                  %v371 = vld [vmem:[%s339 + $0xf0] sm:$0xff]
                  %372 = vst [vmem:[%s340 + $0x78] sm:$0xff] %v371
                $region86: #{lora_linear.1} parent=80 // loop_footer
                  %s338 = sadd.s32 1, %s334
                $region87: #{lora_linear.1} parent=80 // loop_footer_branch
                  %333 = sbr.rel target = $region83
                $region88: #{lora_linear.1} parent=80 // loop_exit
                  _
              $region81: #{lora_linear.1} parent=65 // pred_fallthru
                _
              // Predicated region
              $region89: #{lora_linear.1} parent=65 // pred_check
                _
              $region90: #{lora_linear.1} parent=65 // pred_check_branch
                %374 = sbr.rel target = $region92
              $region91: #{lora_linear.1} parent=65 // pred_region
                _
              $region92: #{lora_linear.1} parent=65 // pred_fallthru
                _
            $region66: #{lora_linear.1} parent=61 // pred_fallthru
              _
            // Predicated region
            $region67: #{lora_linear.1} parent=61 // pred_check
              _
            $region68: #{lora_linear.1} parent=61 // pred_check_branch
              %288 = sbr.rel target = $region70
            $region69: #{lora_linear.1} parent=61 // pred_region
              %s290 = ssub.s32 256, 1
              loop: start=0, step=1, limit=1
              $region71: #{lora_linear.1} parent=69 // loop_pre_header
                _
              $region72: #{lora_linear.1} parent=69 // loop_header
                %s292 = sphi 0, %s296
                %p293 = scmp.ge.s32.totalorder %s292, 1
                %s297 = sphi %s282, %s282
                %s298 = sphi %s277, %s277
              $region73: #{lora_linear.1} parent=69 // loop_header_branch
                %295 = sbr.rel (%p293) target = $region77
              $region74: #{lora_linear.1} parent=69 // loop_body
                %v299 = vld [vmem:[%s297] sm:%s290]
                %300 = vst [vmem:[%s298] sm:%s290] %v299
                %v301 = vld [vmem:[%s297 + $0x10] sm:%s290]
                %302 = vst [vmem:[%s298 + $0x8] sm:%s290] %v301
                %v303 = vld [vmem:[%s297 + $0x20] sm:%s290]
                %304 = vst [vmem:[%s298 + $0x10] sm:%s290] %v303
                %v305 = vld [vmem:[%s297 + $0x30] sm:%s290]
                %306 = vst [vmem:[%s298 + $0x18] sm:%s290] %v305
                %v307 = vld [vmem:[%s297 + $0x40] sm:%s290]
                %308 = vst [vmem:[%s298 + $0x20] sm:%s290] %v307
                %v309 = vld [vmem:[%s297 + $0x50] sm:%s290]
                %310 = vst [vmem:[%s298 + $0x28] sm:%s290] %v309
                %v311 = vld [vmem:[%s297 + $0x60] sm:%s290]
                %312 = vst [vmem:[%s298 + $0x30] sm:%s290] %v311
                %v313 = vld [vmem:[%s297 + $0x70] sm:%s290]
                %314 = vst [vmem:[%s298 + $0x38] sm:%s290] %v313
                %v315 = vld [vmem:[%s297 + $0x80] sm:%s290]
                %316 = vst [vmem:[%s298 + $0x40] sm:%s290] %v315
                %v317 = vld [vmem:[%s297 + $0x90] sm:%s290]
                %318 = vst [vmem:[%s298 + $0x48] sm:%s290] %v317
                %v319 = vld [vmem:[%s297 + $0xa0] sm:%s290]
                %320 = vst [vmem:[%s298 + $0x50] sm:%s290] %v319
                %v321 = vld [vmem:[%s297 + $0xb0] sm:%s290]
                %322 = vst [vmem:[%s298 + $0x58] sm:%s290] %v321
                %v323 = vld [vmem:[%s297 + $0xc0] sm:%s290]
                %324 = vst [vmem:[%s298 + $0x60] sm:%s290] %v323
                %v325 = vld [vmem:[%s297 + $0xd0] sm:%s290]
                %326 = vst [vmem:[%s298 + $0x68] sm:%s290] %v325
                %v327 = vld [vmem:[%s297 + $0xe0] sm:%s290]
                %328 = vst [vmem:[%s298 + $0x70] sm:%s290] %v327
                %v329 = vld [vmem:[%s297 + $0xf0] sm:%s290]
                %330 = vst [vmem:[%s298 + $0x78] sm:%s290] %v329
              $region75: #{lora_linear.1} parent=69 // loop_footer
                %s296 = sadd.s32 1, %s292
              $region76: #{lora_linear.1} parent=69 // loop_footer_branch
                %291 = sbr.rel target = $region72
              $region77: #{lora_linear.1} parent=69 // loop_exit
                _
            $region70: #{lora_linear.1} parent=61 // pred_fallthru
              _
          $region62: #{lora_linear.1} parent=57 // pred_fallthru
            _
          %375 = vnop
        $region58: #{lora_linear.1} parent=15 // pred_fallthru
          _
        // Predicated region
        $region93: #{lora_linear.1} parent=15 // pred_check
          %p376 = pneg %p109
        $region94: #{lora_linear.1} parent=15 // pred_check_branch
          %378 = sbr.rel (%p376) target = $region96
        $region95: #{lora_linear.1} parent=15 // pred_region
          %p379 = scmp.lt.s32.totalorder %s22, 1
          %s380 = scalar_select %p379, %s22, 1
          %s381 = scalar_lea.vmem %s2, %s380
        $region96: #{lora_linear.1} parent=15 // pred_fallthru
          _
        // Predicated region
        $region97: #{lora_linear.1} parent=15 // pred_check
          %p382 = pneg %p135
        $region98: #{lora_linear.1} parent=15 // pred_check_branch
          %384 = sbr.rel (%p382) target = $region100
        $region99: #{lora_linear.1} parent=15 // pred_region
          %s385 = smul.u32 4, %s21
          %p386 = scmp.lt.s32.totalorder %s385, 7
          %s387 = scalar_select %p386, %s385, 7
          %s388 = smul.addr %s387, 8
          %s389 = scalar_lea.vmem %s3, %s388
          %s390 = smul.u32 4, %s21
        $region100: #{lora_linear.1} parent=15 // pred_fallthru
          _
        // Predicated region
        $region101: #{lora_linear.1} parent=15 // pred_check
          %p391 = pneg %p161
        $region102: #{lora_linear.1} parent=15 // pred_check_branch
          %393 = sbr.rel (%p391) target = $region104
        $region103: #{lora_linear.1} parent=15 // pred_region
          %p394 = scmp.lt.s32.totalorder %s22, 1
          %s395 = scalar_select %p394, %s22, 1
          %s396 = smul.addr %s395, 8
          %s397 = scalar_lea.vmem %s4, %s396
        $region104: #{lora_linear.1} parent=15 // pred_fallthru
          _
      $region16: #{lora_linear.1} parent=5 // pred_fallthru
        _
      %p398 = scmp.le.s32.totalorder 1, %s14
      %p399 = scmp.lt.s32.totalorder %s14, 9
      %p400 = pnand %p398, %p399
      %p401 = pneg %p400
      // Predicated region
      $region105: #{lora_linear.1} parent=5 // pred_check
        _
      $region106: #{lora_linear.1} parent=5 // pred_check_branch
        %403 = sbr.rel (%p400) target = $region108
      $region107: #{lora_linear.1} parent=5 // pred_region
        %s404 = ssub.s32 %s14, 1
        %s405 = sand.u32 %s48, 1
        %s406 = sand.u32 %s48, 1
        %s407 = smul.addr %s406, 32
        %s408 = scalar_lea.vmem [#allocation3], %s407
        // Predicated region
        $region109: #{lora_linear.1} parent=107 // pred_check
          %p409 = pneg %p61
        $region110: #{lora_linear.1} parent=107 // pred_check_branch
          %411 = sbr.rel (%p409) target = $region112
        $region111: #{lora_linear.1} parent=107 // pred_region
          _
        $region112: #{lora_linear.1} parent=107 // pred_fallthru
          _
        %s412 = sand.u32 %s76, 1
        %s413 = sand.u32 %s76, 1
        %s414 = smul.addr %s413, 128
        %s415 = scalar_lea.vmem [#allocation4], %s414
        // Predicated region
        $region113: #{lora_linear.1} parent=107 // pred_check
          %p416 = pneg %p89
        $region114: #{lora_linear.1} parent=107 // pred_check_branch
          %418 = sbr.rel (%p416) target = $region116
        $region115: #{lora_linear.1} parent=107 // pred_region
          _
        $region116: #{lora_linear.1} parent=107 // pred_fallthru
          _
        %s419 = sand.u32 %s48, 1
        %s420 = sand.u32 %s48, 1
        %s421 = smul.addr %s420, 32
        %s422 = scalar_lea.vmem [#allocation3], %s421
        %p423 = pneg %p61
        %p424 = pneg %p58
        %s425 = sand.u32 %s76, 1
        %s426 = sand.u32 %s76, 1
        %s427 = smul.addr %s426, 128
        %s428 = scalar_lea.vmem [#allocation4], %s427
        %p429 = pneg %p89
        %p430 = pneg %p86
        %p431 = scmp.lt.s32.totalorder %s25, 1
        %s432 = scalar_select %p431, %s25, 1
        %s433 = scalar_lea.vmem %s2, %s432
        %p434 = pneg %p115
        %p435 = pneg %p112
        %s436 = smul.u32 4, %s24
        %p437 = scmp.lt.s32.totalorder %s436, 7
        %s438 = scalar_select %p437, %s436, 7
        %s439 = smul.addr %s438, 8
        %s440 = scalar_lea.vmem %s3, %s439
        %p441 = pneg %p141
        %p442 = pneg %p138
        %p443 = scmp.lt.s32.totalorder %s25, 1
        %s444 = scalar_select %p443, %s25, 1
        %s445 = smul.addr %s444, 8
        %s446 = scalar_lea.vmem %s4, %s445
        %p447 = pneg %p167
        %p448 = pneg %p164
        %p449 = pneg %p195
        %p450 = pneg %p192
        %s451 = sand.u32 %s182, 1
        %s452 = scalar_lea.sflag [#allocation6], %s451
        %s453 = sand.u32 %s182, 1
        %s454 = smul.addr %s453, 32
        %s455 = scalar_lea.vmem [#allocation5], %s454
        %s456 = smul.u32 4, %s24
        %s457 = smul.u32 16, %s26
        %p458 = scmp.lt.s32.totalorder %s25, 1
        %s459 = scalar_select %p458, %s25, 1
        %s460 = scalar_lea.vmem %s2, %s459
        %s461 = smul.u32 4, %s24
        %p462 = scmp.lt.s32.totalorder %s461, 7
        %s463 = scalar_select %p462, %s461, 7
        %s464 = smul.addr %s463, 8
        %s465 = scalar_lea.vmem %s3, %s464
        %s466 = smul.u32 4, %s24
        %p467 = scmp.lt.s32.totalorder %s25, 1
        %s468 = scalar_select %p467, %s25, 1
        %s469 = smul.addr %s468, 8
        %s470 = scalar_lea.vmem %s4, %s469
        %s471 = smul.u32 4, %s24
        %v472 = vld [vmem:[%s408] sm:$0xff]
        %v473 = vld [vmem:[%s408 + $0x8] sm:$0xff]
        %v474 = vld [vmem:[%s408 + $0x10] sm:$0xff]
        %v475 = vld [vmem:[%s408 + $0x18] sm:$0xff]
        %v476 = vld [vmem:[%s415] sm:$0xff]
        %v477 = vld [vmem:[%s415 + $0x8] sm:$0xff]
        %v478 = vld [vmem:[%s415 + $0x10] sm:$0xff]
        %v479 = vld [vmem:[%s415 + $0x18] sm:$0xff]
        %v480 = vld [vmem:[%s415 + $0x20] sm:$0xff]
        %v481 = vld [vmem:[%s415 + $0x28] sm:$0xff]
        %v482 = vld [vmem:[%s415 + $0x30] sm:$0xff]
        %v483 = vld [vmem:[%s415 + $0x38] sm:$0xff]
        %v484 = vld [vmem:[%s415 + $0x40] sm:$0xff]
        %v485 = vld [vmem:[%s415 + $0x48] sm:$0xff]
        %v486 = vld [vmem:[%s415 + $0x50] sm:$0xff]
        %v487 = vld [vmem:[%s415 + $0x58] sm:$0xff]
        %v488 = vld [vmem:[%s415 + $0x60] sm:$0xff]
        %v489 = vld [vmem:[%s415 + $0x68] sm:$0xff]
        %v490 = vld [vmem:[%s415 + $0x70] sm:$0xff]
        %v491 = vld [vmem:[%s415 + $0x78] sm:$0xff]
        %492 = vmatprep.subr.mxu0 0.0
        %493 = vmatpush1.msra.mxu0 %v491
        %494 = vmatprep.subr.mxu0 0.0
        %495 = vmatpush1.msra.mxu0 %v490
        %496 = vmatprep.subr.mxu0 0.0
        %497 = vmatpush1.msra.mxu0 %v489
        %498 = vmatprep.subr.mxu0 0.0
        %499 = vmatpush1.msra.mxu0 %v488
        %500 = vmatprep.subr.mxu0 0.0
        %501 = vmatpush1.msra.mxu0 %v487
        %502 = vmatprep.subr.mxu0 0.0
        %503 = vmatpush1.msra.mxu0 %v486
        %504 = vmatprep.subr.mxu0 0.0
        %505 = vmatpush1.msra.mxu0 %v485
        %506 = vmatprep.subr.mxu0 0.0
        %507 = vmatpush1.msra.mxu0 %v484
        %508 = vmatprep.subr.mxu0 0.0
        %509 = vmatpush1.msra.mxu0 %v483
        %510 = vmatprep.subr.mxu0 0.0
        %511 = vmatpush1.msra.mxu0 %v482
        %512 = vmatprep.subr.mxu0 0.0
        %513 = vmatpush1.msra.mxu0 %v481
        %514 = vmatprep.subr.mxu0 0.0
        %515 = vmatpush1.msra.mxu0 %v480
        %516 = vmatprep.subr.mxu0 0.0
        %517 = vmatpush1.msra.mxu0 %v479
        %518 = vmatprep.subr.mxu0 0.0
        %519 = vmatpush1.msra.mxu0 %v478
        %520 = vmatprep.subr.mxu0 0.0
        %521 = vmatpush1.msra.mxu0 %v477
        %522 = vmatprep.subr.mxu0 0.0
        %523 = vmatpush1.msra.mxu0 %v476
        %524 = vmatprep.subr.mxu0 0.0
        %525 = vmatpush2.msra.mxu0 0.0
        %526 = vmatprep.subr.mxu0 0.0
        %527 = vmatpush2.msra.mxu0 0.0
        %528 = vmatprep.subr.mxu0 0.0
        %529 = vmatpush2.msra.mxu0 0.0
        %530 = vmatprep.subr.mxu0 0.0
        %531 = vmatpush2.msra.mxu0 0.0
        %532 = vmatprep.subr.mxu0 0.0
        %533 = vmatpush2.msra.mxu0 0.0
        %534 = vmatprep.subr.mxu0 0.0
        %535 = vmatpush2.msra.mxu0 0.0
        %536 = vmatprep.subr.mxu0 0.0
        %537 = vmatpush2.msra.mxu0 0.0
        %538 = vmatprep.subr.mxu0 0.0
        %539 = vmatpush2.msra.mxu0 0.0
        %540 = vmatprep.subr.mxu0 0.0
        %541 = vmatpush2.msra.mxu0 0.0
        %542 = vmatprep.subr.mxu0 0.0
        %543 = vmatpush2.msra.mxu0 0.0
        %544 = vmatprep.subr.mxu0 0.0
        %545 = vmatpush2.msra.mxu0 0.0
        %546 = vmatprep.subr.mxu0 0.0
        %547 = vmatpush2.msra.mxu0 0.0
        %548 = vmatprep.subr.mxu0 0.0
        %549 = vmatpush2.msra.mxu0 0.0
        %550 = vmatprep.subr.mxu0 0.0
        %551 = vmatpush2.msra.mxu0 0.0
        %552 = vmatprep.subr.mxu0 0.0
        %553 = vmatpush2.msra.mxu0 0.0
        %554 = vmatprep.subr.mxu0 0.0
        %555 = vmatpush2.msra.mxu0 0.0
        %556 = vmatprep.mubr.f32.mxu0 0.0
        %557 = vmatmul.mubr.f32.gmra.mxu0 %v472
        %v558 = vpop.f32.mrf.mxu0
        %v559 = vadd.f32 0.0, %v558
        %v560 = vpop.f32.mrf.mxu0
        %561 = vmatprep.mubr.f32.mxu0 0.0
        %562 = vmatmul.mubr.f32.gmra.mxu0 %v473
        %v563 = vpop.f32.mrf.mxu0
        %v564 = vadd.f32 0.0, %v563
        %v565 = vpop.f32.mrf.mxu0
        %566 = vmatprep.mubr.f32.mxu0 0.0
        %567 = vmatmul.mubr.f32.gmra.mxu0 %v474
        %v568 = vpop.f32.mrf.mxu0
        %v569 = vadd.f32 0.0, %v568
        %v570 = vpop.f32.mrf.mxu0
        %571 = vmatprep.mubr.f32.mxu0 0.0
        %572 = vmatmul.mubr.f32.gmra.mxu0 %v475
        %v573 = vpop.f32.mrf.mxu0
        %v574 = vadd.f32 0.0, %v573
        %v575 = vpop.f32.mrf.mxu0
        %576 = vdwg.mxu0
        %p577 = scmp.eq.s32.totalorder %s26, 0
        // Predicated region
        $region117: #{lora_linear.1} parent=107 // pred_check
          %p578 = pneg %p577
        $region118: #{lora_linear.1} parent=107 // pred_check_branch
          %580 = sbr.rel (%p578) target = $region120
        $region119: #{lora_linear.1} parent=107 // pred_region
          %v581 = vld [vmem:[%s460] sm:$0x1]
          %v583 = vlaneseq
          %v584 = vshrl.u32 %v583, 7
          %v585 = vsub.s32 0, %v584
          %v586 = vrot.slane %v581, %v585
          %v588 = vadd.f32 %v559, %v586
          %v589 = vadd.f32 %v564, %v586
          %v590 = vadd.f32 %v569, %v586
          %v591 = vadd.f32 %v574, %v586
          %592 = vst [vmem:[#allocation2] sm:$0xff] %v588
          %593 = vst [vmem:[#allocation2 + $0x8] sm:$0xff] %v589
          %594 = vst [vmem:[#allocation2 + $0x10] sm:$0xff] %v590
          %595 = vst [vmem:[#allocation2 + $0x18] sm:$0xff] %v591
        $region120: #{lora_linear.1} parent=107 // pred_fallthru
          _
        %p596 = scmp.ne.s32.totalorder %s26, 0
        // Predicated region
        $region121: #{lora_linear.1} parent=107 // pred_check
          %p597 = pneg %p596
        $region122: #{lora_linear.1} parent=107 // pred_check_branch
          %599 = sbr.rel (%p597) target = $region124
        $region123: #{lora_linear.1} parent=107 // pred_region
          %v600 = vld [vmem:[#allocation2] sm:$0xff]
          %v601 = vld [vmem:[#allocation2 + $0x8] sm:$0xff]
          %v602 = vld [vmem:[#allocation2 + $0x10] sm:$0xff]
          %v603 = vld [vmem:[#allocation2 + $0x18] sm:$0xff]
          %v604 = vadd.f32 %v600, %v559
          %v605 = vadd.f32 %v601, %v564
          %v606 = vadd.f32 %v602, %v569
          %v607 = vadd.f32 %v603, %v574
          %608 = vst [vmem:[#allocation2] sm:$0xff] %v604
          %609 = vst [vmem:[#allocation2 + $0x8] sm:$0xff] %v605
          %610 = vst [vmem:[#allocation2 + $0x10] sm:$0xff] %v606
          %611 = vst [vmem:[#allocation2 + $0x18] sm:$0xff] %v607
        $region124: #{lora_linear.1} parent=107 // pred_fallthru
          _
        %p612 = scmp.eq.s32.totalorder %s26, 1
        // Predicated region
        $region125: #{lora_linear.1} parent=107 // pred_check
          %p613 = pneg %p612
        $region126: #{lora_linear.1} parent=107 // pred_check_branch
          %615 = sbr.rel (%p613) target = $region128
        $region127: #{lora_linear.1} parent=107 // pred_region
          %v616 = vld [vmem:[%s465] sm:$0xff]
          %v617 = vld [vmem:[%s465 + $0x8] sm:$0xff]
          %v618 = vld [vmem:[%s465 + $0x10] sm:$0xff]
          %v619 = vld [vmem:[%s465 + $0x18] sm:$0xff]
          %v620 = vld [vmem:[%s470] sm:$0xff]
          %vm621 = vcmask 64512
          %v623 = vsel %vm621, %v616, 0
          %v626 = vsel %vm621, %v617, 0
          %v629 = vsel %vm621, %v618, 0
          %v632 = vsel %vm621, %v619, 0
          %634 = vmatprep.subr.mxu0 0.0
          %635 = vmatpush1.msra.mxu0 0.0
          %636 = vmatprep.subr.mxu0 0.0
          %637 = vmatpush1.msra.mxu0 0.0
          %638 = vmatprep.subr.mxu0 0.0
          %639 = vmatpush1.msra.mxu0 0.0
          %640 = vmatprep.subr.mxu0 0.0
          %641 = vmatpush1.msra.mxu0 0.0
          %642 = vmatprep.subr.mxu0 0.0
          %643 = vmatpush1.msra.mxu0 0.0
          %644 = vmatprep.subr.mxu0 0.0
          %645 = vmatpush1.msra.mxu0 0.0
          %646 = vmatprep.subr.mxu0 0.0
          %647 = vmatpush1.msra.mxu0 0.0
          %648 = vmatprep.subr.mxu0 0.0
          %649 = vmatpush1.msra.mxu0 0.0
          %650 = vmatprep.subr.mxu0 0.0
          %651 = vmatpush1.msra.mxu0 0.0
          %652 = vmatprep.subr.mxu0 0.0
          %653 = vmatpush1.msra.mxu0 0.0
          %654 = vmatprep.subr.mxu0 0.0
          %655 = vmatpush1.msra.mxu0 0.0
          %656 = vmatprep.subr.mxu0 0.0
          %657 = vmatpush1.msra.mxu0 0.0
          %658 = vmatprep.subr.mxu0 0.0
          %659 = vmatpush1.msra.mxu0 0.0
          %660 = vmatprep.subr.mxu0 0.0
          %661 = vmatpush1.msra.mxu0 0.0
          %662 = vmatprep.subr.mxu0 0.0
          %663 = vmatpush1.msra.mxu0 0.0
          %664 = vmatprep.subr.mxu0 0.0
          %665 = vmatpush1.msra.mxu0 %v620
          %666 = vmatprep.subr.mxu0 0.0
          %667 = vmatpush2.msra.mxu0 0.0
          %668 = vmatprep.subr.mxu0 0.0
          %669 = vmatpush2.msra.mxu0 0.0
          %670 = vmatprep.subr.mxu0 0.0
          %671 = vmatpush2.msra.mxu0 0.0
          %672 = vmatprep.subr.mxu0 0.0
          %673 = vmatpush2.msra.mxu0 0.0
          %674 = vmatprep.subr.mxu0 0.0
          %675 = vmatpush2.msra.mxu0 0.0
          %676 = vmatprep.subr.mxu0 0.0
          %677 = vmatpush2.msra.mxu0 0.0
          %678 = vmatprep.subr.mxu0 0.0
          %679 = vmatpush2.msra.mxu0 0.0
          %680 = vmatprep.subr.mxu0 0.0
          %681 = vmatpush2.msra.mxu0 0.0
          %682 = vmatprep.subr.mxu0 0.0
          %683 = vmatpush2.msra.mxu0 0.0
          %684 = vmatprep.subr.mxu0 0.0
          %685 = vmatpush2.msra.mxu0 0.0
          %686 = vmatprep.subr.mxu0 0.0
          %687 = vmatpush2.msra.mxu0 0.0
          %688 = vmatprep.subr.mxu0 0.0
          %689 = vmatpush2.msra.mxu0 0.0
          %690 = vmatprep.subr.mxu0 0.0
          %691 = vmatpush2.msra.mxu0 0.0
          %692 = vmatprep.subr.mxu0 0.0
          %693 = vmatpush2.msra.mxu0 0.0
          %694 = vmatprep.subr.mxu0 0.0
          %695 = vmatpush2.msra.mxu0 0.0
          %696 = vmatprep.subr.mxu0 0.0
          %697 = vmatpush2.msra.mxu0 0.0
          %698 = vmatprep.mubr.f32.mxu0 0.0
          %699 = vmatmul.mubr.f32.gmra.mxu0 %v623
          %v700 = vpop.f32.mrf.mxu0
          %v701 = vadd.f32 0.0, %v700
          %v702 = vpop.f32.mrf.mxu0
          %703 = vmatprep.mubr.f32.mxu0 0.0
          %704 = vmatmul.mubr.f32.gmra.mxu0 %v626
          %v705 = vpop.f32.mrf.mxu0
          %v706 = vadd.f32 0.0, %v705
          %v707 = vpop.f32.mrf.mxu0
          %708 = vmatprep.mubr.f32.mxu0 0.0
          %709 = vmatmul.mubr.f32.gmra.mxu0 %v629
          %v710 = vpop.f32.mrf.mxu0
          %v711 = vadd.f32 0.0, %v710
          %v712 = vpop.f32.mrf.mxu0
          %713 = vmatprep.mubr.f32.mxu0 0.0
          %714 = vmatmul.mubr.f32.gmra.mxu0 %v632
          %v715 = vpop.f32.mrf.mxu0
          %v716 = vadd.f32 0.0, %v715
          %v717 = vpop.f32.mrf.mxu0
          %718 = vdwg.mxu0
          %v719 = vld [vmem:[#allocation2] sm:$0xff]
          %v720 = vld [vmem:[#allocation2 + $0x8] sm:$0xff]
          %v721 = vld [vmem:[#allocation2 + $0x10] sm:$0xff]
          %v722 = vld [vmem:[#allocation2 + $0x18] sm:$0xff]
          %v723 = vadd.f32 %v719, %v701
          %v724 = vadd.f32 %v720, %v706
          %v725 = vadd.f32 %v721, %v711
          %v726 = vadd.f32 %v722, %v716
          %727 = vst [vmem:[%s455] sm:$0xff] %v723
          %728 = vst [vmem:[%s455 + $0x8] sm:$0xff] %v724
          %729 = vst [vmem:[%s455 + $0x10] sm:$0xff] %v725
          %730 = vst [vmem:[%s455 + $0x18] sm:$0xff] %v726
        $region128: #{lora_linear.1} parent=107 // pred_fallthru
          _
        %s731 = sand.u32 %s182, 1
        %s732 = scalar_lea.sflag [#allocation6], %s731
        %s733 = sand.u32 %s182, 1
        %s734 = smul.addr %s733, 32
        %s735 = scalar_lea.vmem [#allocation5], %s734
        // Predicated region
        $region129: #{lora_linear.1} parent=107 // pred_check
          %p736 = pneg %p192
        $region130: #{lora_linear.1} parent=107 // pred_check_branch
          %738 = sbr.rel (%p736) target = $region132
        $region131: #{lora_linear.1} parent=107 // pred_region
          %s739 = smul.u32 4, %s24
          %s741 = ssub.s32 512, 512
          %742 = vsyncadd %s732, %s741
          %s743 = smul.addr %s739, 2
          %s744 = sadd.s32 %s25, %s743
          %s745 = smul.addr %s744, 128
          %s746 = scalar_lea.hbm %s5, %s745
          %s747 = sshll.u32 %s735, 4
          %s748 = int_to_ptr.vmem [resolvable:$true] %s747
          %753 = dma.vmem_to_hbm [thread:$0]  %s748, 512, %s746, %s732, 128, 256, 8
        $region132: #{lora_linear.1} parent=107 // pred_fallthru
          _
      $region108: #{lora_linear.1} parent=5 // pred_fallthru
        _
      %p754 = scmp.le.s32.totalorder 2, %s14
      // Predicated region
      $region133: #{lora_linear.1} parent=5 // pred_check
        %p755 = pneg %p754
      $region134: #{lora_linear.1} parent=5 // pred_check_branch
        %757 = sbr.rel (%p755) target = $region136
      $region135: #{lora_linear.1} parent=5 // pred_region
        %s758 = ssub.s32 %s14, 2
        // Predicated region
        $region137: #{lora_linear.1} parent=135 // pred_check
          %p759 = pneg %p198
        $region138: #{lora_linear.1} parent=135 // pred_check_branch
          %761 = sbr.rel (%p759) target = $region140
        $region139: #{lora_linear.1} parent=135 // pred_region
          %s762 = sand.u32 %s183, 1
          %s763 = scalar_lea.sflag [#allocation6], %s762
          %s764 = sand.u32 %s183, 1
          %s765 = smul.addr %s764, 32
          %s766 = scalar_lea.vmem [#allocation5], %s765
          %767 = dma.done %s763, 512
        $region140: #{lora_linear.1} parent=135 // pred_fallthru
          _
      $region136: #{lora_linear.1} parent=5 // pred_fallthru
        _
    $region6: #{lora_linear.1} parent=1 // loop_footer
      %s18 = sadd.s32 1, %s14
    $region7: #{lora_linear.1} parent=1 // loop_footer_branch
      %13 = sbr.rel target = $region3
    $region8: #{lora_linear.1} parent=1 // loop_exit
      _
    %768 = vsyncpa [#allocation6], 1
    %s769 = scalar_lea.sflag [#allocation6], 1
    %770 = vsyncpa %s769, 1

</llo_original>
